<compile_context>
chip_gen: v5e
topology: v5e:2x2
jax: 0.10.0
libtpu: 0.0.40
codegen_flags: <defaults>
</compile_context>

<pallas_src>
import functools

import jax
import jax.numpy as jnp
import numpy as np
from jax.experimental import pallas as pl
from jax.experimental.pallas import tpu as pltpu  # noqa: F401  (TPU backend)

# Problem sizes (small, consistent with the module: Conv1d(in_features,
# out_features, kernel_size=1) over a (B, in_features, T) sequence).
B = 2          # batch
C_IN = 32      # in_features
C_OUT = 8      # out_features
T = 128        # sequence length (lane axis)


def attblock_kernel(x_ref, w_ref, b_ref, pooled_ref, att_ref, cla_ref,
                    *, activation, batch, c_in, c_out):
    w = w_ref[...]        # (2*C_OUT, C_IN)   rows [0:C_OUT) = att, [C_OUT:) = cla
    bias = b_ref[...]     # (2*C_OUT, 1)

    # Static unrolled batch loop (B is tiny); everything below is per-sample.
    for bi in range(batch):
        xb = x_ref[bi]    # (C_IN, T)  channels on sublanes, time on lanes

        # Both 1x1 convolutions at once: y[o, t] = sum_i w[o, i] * x[i, t] + b[o].
        # 32-step broadcast-FMA into a (2*C_OUT, T) accumulator: exact f32 on
        # the VPU, ~4 vregs of live state, no (16,32,128) intermediate.
        acc = jnp.zeros((2 * c_out, xb.shape[-1]), jnp.float32)
        for i in range(c_in):
            acc = acc + w[:, i:i + 1] * xb[i:i + 1, :]
        y = acc + bias                                   # (2*C_OUT, T)

        att_logits = jnp.tanh(y[:c_out, :])              # (C_OUT, T)   -> EUP
        cla = y[c_out:, :]                               # (C_OUT, T)
        if activation == "sigmoid":
            cla = 1.0 / (1.0 + jnp.exp(-cla))

        # Numerically-stable softmax over the time (lane) axis.
        m = jnp.max(att_logits, axis=-1, keepdims=True)
        e = jnp.exp(att_logits - m)
        norm_att = e / jnp.sum(e, axis=-1, keepdims=True)

        att_ref[bi] = norm_att                           # full-width (C_OUT, T) store
        cla_ref[bi] = cla                                # full-width (C_OUT, T) store
        pooled_ref[bi] = jnp.sum(norm_att * cla, axis=-1)   # (C_OUT,)


def pack_params(w_att, b_att, w_cla, b_cla):
    """Pack both conv branches into one weight / one bias block.

    Call once at module init (outside the per-call hot path)."""
    w_all = jnp.concatenate([w_att, w_cla], axis=0)                  # (2*C_OUT, C_IN)
    b_all = jnp.concatenate([b_att, b_cla], axis=0).reshape(-1, 1)   # (2*C_OUT, 1)
    return w_all, b_all


@functools.partial(jax.jit, static_argnames=("activation",))
def att_block_v2(x, w_all, b_all, activation="linear"):
    """Fused AttBlockV2 forward. Returns (pooled, norm_att, cla)."""
    batch, c_in, t = x.shape
    c_out = w_all.shape[0] // 2

    kernel = functools.partial(attblock_kernel, activation=activation,
                               batch=batch, c_in=c_in, c_out=c_out)
    # Single invocation, no grid: whole arrays are resident in VMEM
    # (total footprint << VMEM on every generation), so there is no
    # pipelining machinery and no per-step overhead.
    pooled, norm_att, cla = pl.pallas_call(
        kernel,
        out_shape=(jax.ShapeDtypeStruct((batch, c_out), jnp.float32),
                   jax.ShapeDtypeStruct((batch, c_out, t), jnp.float32),
                   jax.ShapeDtypeStruct((batch, c_out, t), jnp.float32)),
    )(x, w_all, b_all)
    return pooled, norm_att, cla


# --------------------------- pure-JAX reference ---------------------------
def reference(x, w_att, b_att, w_cla, b_cla, activation="linear"):
    att = jnp.einsum("oi,bit->bot", w_att, x, precision="highest") + b_att[None, :, None]
    cla = jnp.einsum("oi,bit->bot", w_cla, x, precision="highest") + b_cla[None, :, None]
    norm_att = jax.nn.softmax(jnp.tanh(att), axis=-1)
    if activation == "sigmoid":
        cla = jax.nn.sigmoid(cla)
    pooled = jnp.sum(norm_att * cla, axis=2)
    return pooled, norm_att, cla


if __name__ == "__main__":
    key = jax.random.PRNGKey(0)
    kx, k1, k2, k3, k4 = jax.random.split(key, 5)

    x = jax.random.normal(kx, (B, C_IN, T), dtype=jnp.float32)

    # Synthetic parameters (Conv1d kernel_size=1 -> plain (out, in) matrices + bias).
    w_att = jax.random.normal(k1, (C_OUT, C_IN), jnp.float32) / np.sqrt(C_IN)
    b_att = jax.random.normal(k2, (C_OUT,), jnp.float32) * 0.1
    w_cla = jax.random.normal(k3, (C_OUT, C_IN), jnp.float32) / np.sqrt(C_IN)
    b_cla = jax.random.normal(k4, (C_OUT,), jnp.float32) * 0.1

    # Pack once, at "module init" time, not per call.
    w_all, b_all = pack_params(w_att, b_att, w_cla, b_cla)

    for act in ("linear", "sigmoid"):   # module default is 'linear'
        out, norm_att, cla = att_block_v2(x, w_all, b_all, activation=act)
        jax.block_until_ready((out, norm_att, cla))

        ref_out, ref_att, ref_cla = reference(x, w_att, b_att, w_cla, b_cla, activation=act)
        np.testing.assert_allclose(np.asarray(out), np.asarray(ref_out), rtol=1e-4, atol=1e-4)
        np.testing.assert_allclose(np.asarray(norm_att), np.asarray(ref_att), rtol=1e-4, atol=1e-4)
        np.testing.assert_allclose(np.asarray(cla), np.asarray(ref_cla), rtol=1e-4, atol=1e-4)

    print("KERNEL_OK")
</pallas_src>

<mosaic_0001>
module attributes {stable_mosaic.version = 11 : i64} {
  func.func @attblock_kernel(%arg0: memref<2x32x128xf32, #tpu.memory_space<vmem>>, %arg1: memref<16x32xf32, #tpu.memory_space<vmem>>, %arg2: memref<16x1xf32, #tpu.memory_space<vmem>>, %arg3: memref<2x8xf32, #tpu.memory_space<vmem>>, %arg4: memref<2x8x128xf32, #tpu.memory_space<vmem>>, %arg5: memref<2x8x128xf32, #tpu.memory_space<vmem>>) attributes {dimension_semantics = [], scalar_prefetch = 0 : i64, scratch_operands = 0 : i64, tpu.core_type = #tpu.core_type<tc>} {
    %c0 = arith.constant 0 : index
    %c0_0 = arith.constant 0 : index
    %0 = vector.load %arg1[%c0, %c0_0] : memref<16x32xf32, #tpu.memory_space<vmem>>, vector<16x32xf32>
    %c0_1 = arith.constant 0 : index
    %c0_2 = arith.constant 0 : index
    %1 = vector.load %arg2[%c0_1, %c0_2] : memref<16x1xf32, #tpu.memory_space<vmem>>, vector<16x1xf32>
    %c0_3 = arith.constant 0 : index
    %c0_4 = arith.constant 0 : index
    %c0_5 = arith.constant 0 : index
    %2 = vector.load %arg0[%c0_3, %c0_4, %c0_5] : memref<2x32x128xf32, #tpu.memory_space<vmem>>, vector<1x32x128xf32>
    %3 = vector.shape_cast %2 : vector<1x32x128xf32> to vector<32x128xf32>
    %cst = arith.constant 0.000000e+00 : f32
    %4 = vector.broadcast %cst : f32 to vector<16x128xf32>
    %5 = vector.extract_strided_slice %0 {offsets = [0, 0], sizes = [16, 1], strides = [1, 1]} : vector<16x32xf32> to vector<16x1xf32>
    %6 = vector.extract_strided_slice %3 {offsets = [0, 0], sizes = [1, 128], strides = [1, 1]} : vector<32x128xf32> to vector<1x128xf32>
    %7 = vector.broadcast %5 : vector<16x1xf32> to vector<16x128xf32>
    %8 = vector.broadcast %6 : vector<1x128xf32> to vector<16x128xf32>
    %9 = arith.mulf %7, %8 : vector<16x128xf32>
    %10 = arith.addf %4, %9 : vector<16x128xf32>
    %11 = vector.extract_strided_slice %0 {offsets = [0, 1], sizes = [16, 1], strides = [1, 1]} : vector<16x32xf32> to vector<16x1xf32>
    %12 = vector.extract_strided_slice %3 {offsets = [1, 0], sizes = [1, 128], strides = [1, 1]} : vector<32x128xf32> to vector<1x128xf32>
    %13 = vector.broadcast %11 : vector<16x1xf32> to vector<16x128xf32>
    %14 = vector.broadcast %12 : vector<1x128xf32> to vector<16x128xf32>
    %15 = arith.mulf %13, %14 : vector<16x128xf32>
    %16 = arith.addf %10, %15 : vector<16x128xf32>
    %17 = vector.extract_strided_slice %0 {offsets = [0, 2], sizes = [16, 1], strides = [1, 1]} : vector<16x32xf32> to vector<16x1xf32>
    %18 = vector.extract_strided_slice %3 {offsets = [2, 0], sizes = [1, 128], strides = [1, 1]} : vector<32x128xf32> to vector<1x128xf32>
    %19 = vector.broadcast %17 : vector<16x1xf32> to vector<16x128xf32>
    %20 = vector.broadcast %18 : vector<1x128xf32> to vector<16x128xf32>
    %21 = arith.mulf %19, %20 : vector<16x128xf32>
    %22 = arith.addf %16, %21 : vector<16x128xf32>
    %23 = vector.extract_strided_slice %0 {offsets = [0, 3], sizes = [16, 1], strides = [1, 1]} : vector<16x32xf32> to vector<16x1xf32>
    %24 = vector.extract_strided_slice %3 {offsets = [3, 0], sizes = [1, 128], strides = [1, 1]} : vector<32x128xf32> to vector<1x128xf32>
    %25 = vector.broadcast %23 : vector<16x1xf32> to vector<16x128xf32>
    %26 = vector.broadcast %24 : vector<1x128xf32> to vector<16x128xf32>
    %27 = arith.mulf %25, %26 : vector<16x128xf32>
    %28 = arith.addf %22, %27 : vector<16x128xf32>
    %29 = vector.extract_strided_slice %0 {offsets = [0, 4], sizes = [16, 1], strides = [1, 1]} : vector<16x32xf32> to vector<16x1xf32>
    %30 = vector.extract_strided_slice %3 {offsets = [4, 0], sizes = [1, 128], strides = [1, 1]} : vector<32x128xf32> to vector<1x128xf32>
    %31 = vector.broadcast %29 : vector<16x1xf32> to vector<16x128xf32>
    %32 = vector.broadcast %30 : vector<1x128xf32> to vector<16x128xf32>
    %33 = arith.mulf %31, %32 : vector<16x128xf32>
    %34 = arith.addf %28, %33 : vector<16x128xf32>
    %35 = vector.extract_strided_slice %0 {offsets = [0, 5], sizes = [16, 1], strides = [1, 1]} : vector<16x32xf32> to vector<16x1xf32>
    %36 = vector.extract_strided_slice %3 {offsets = [5, 0], sizes = [1, 128], strides = [1, 1]} : vector<32x128xf32> to vector<1x128xf32>
    %37 = vector.broadcast %35 : vector<16x1xf32> to vector<16x128xf32>
    %38 = vector.broadcast %36 : vector<1x128xf32> to vector<16x128xf32>
    %39 = arith.mulf %37, %38 : vector<16x128xf32>
    %40 = arith.addf %34, %39 : vector<16x128xf32>
    %41 = vector.extract_strided_slice %0 {offsets = [0, 6], sizes = [16, 1], strides = [1, 1]} : vector<16x32xf32> to vector<16x1xf32>
    %42 = vector.extract_strided_slice %3 {offsets = [6, 0], sizes = [1, 128], strides = [1, 1]} : vector<32x128xf32> to vector<1x128xf32>
    %43 = vector.broadcast %41 : vector<16x1xf32> to vector<16x128xf32>
    %44 = vector.broadcast %42 : vector<1x128xf32> to vector<16x128xf32>
    %45 = arith.mulf %43, %44 : vector<16x128xf32>
    %46 = arith.addf %40, %45 : vector<16x128xf32>
    %47 = vector.extract_strided_slice %0 {offsets = [0, 7], sizes = [16, 1], strides = [1, 1]} : vector<16x32xf32> to vector<16x1xf32>
    %48 = vector.extract_strided_slice %3 {offsets = [7, 0], sizes = [1, 128], strides = [1, 1]} : vector<32x128xf32> to vector<1x128xf32>
    %49 = vector.broadcast %47 : vector<16x1xf32> to vector<16x128xf32>
    %50 = vector.broadcast %48 : vector<1x128xf32> to vector<16x128xf32>
    %51 = arith.mulf %49, %50 : vector<16x128xf32>
    %52 = arith.addf %46, %51 : vector<16x128xf32>
    %53 = vector.extract_strided_slice %0 {offsets = [0, 8], sizes = [16, 1], strides = [1, 1]} : vector<16x32xf32> to vector<16x1xf32>
    %54 = vector.extract_strided_slice %3 {offsets = [8, 0], sizes = [1, 128], strides = [1, 1]} : vector<32x128xf32> to vector<1x128xf32>
    %55 = vector.broadcast %53 : vector<16x1xf32> to vector<16x128xf32>
    %56 = vector.broadcast %54 : vector<1x128xf32> to vector<16x128xf32>
    %57 = arith.mulf %55, %56 : vector<16x128xf32>
    %58 = arith.addf %52, %57 : vector<16x128xf32>
    %59 = vector.extract_strided_slice %0 {offsets = [0, 9], sizes = [16, 1], strides = [1, 1]} : vector<16x32xf32> to vector<16x1xf32>
    %60 = vector.extract_strided_slice %3 {offsets = [9, 0], sizes = [1, 128], strides = [1, 1]} : vector<32x128xf32> to vector<1x128xf32>
    %61 = vector.broadcast %59 : vector<16x1xf32> to vector<16x128xf32>
    %62 = vector.broadcast %60 : vector<1x128xf32> to vector<16x128xf32>
    %63 = arith.mulf %61, %62 : vector<16x128xf32>
    %64 = arith.addf %58, %63 : vector<16x128xf32>
    %65 = vector.extract_strided_slice %0 {offsets = [0, 10], sizes = [16, 1], strides = [1, 1]} : vector<16x32xf32> to vector<16x1xf32>
    %66 = vector.extract_strided_slice %3 {offsets = [10, 0], sizes = [1, 128], strides = [1, 1]} : vector<32x128xf32> to vector<1x128xf32>
    %67 = vector.broadcast %65 : vector<16x1xf32> to vector<16x128xf32>
    %68 = vector.broadcast %66 : vector<1x128xf32> to vector<16x128xf32>
    %69 = arith.mulf %67, %68 : vector<16x128xf32>
    %70 = arith.addf %64, %69 : vector<16x128xf32>
    %71 = vector.extract_strided_slice %0 {offsets = [0, 11], sizes = [16, 1], strides = [1, 1]} : vector<16x32xf32> to vector<16x1xf32>
    %72 = vector.extract_strided_slice %3 {offsets = [11, 0], sizes = [1, 128], strides = [1, 1]} : vector<32x128xf32> to vector<1x128xf32>
    %73 = vector.broadcast %71 : vector<16x1xf32> to vector<16x128xf32>
    %74 = vector.broadcast %72 : vector<1x128xf32> to vector<16x128xf32>
    %75 = arith.mulf %73, %74 : vector<16x128xf32>
    %76 = arith.addf %70, %75 : vector<16x128xf32>
    %77 = vector.extract_strided_slice %0 {offsets = [0, 12], sizes = [16, 1], strides = [1, 1]} : vector<16x32xf32> to vector<16x1xf32>
    %78 = vector.extract_strided_slice %3 {offsets = [12, 0], sizes = [1, 128], strides = [1, 1]} : vector<32x128xf32> to vector<1x128xf32>
    %79 = vector.broadcast %77 : vector<16x1xf32> to vector<16x128xf32>
    %80 = vector.broadcast %78 : vector<1x128xf32> to vector<16x128xf32>
    %81 = arith.mulf %79, %80 : vector<16x128xf32>
    %82 = arith.addf %76, %81 : vector<16x128xf32>
    %83 = vector.extract_strided_slice %0 {offsets = [0, 13], sizes = [16, 1], strides = [1, 1]} : vector<16x32xf32> to vector<16x1xf32>
    %84 = vector.extract_strided_slice %3 {offsets = [13, 0], sizes = [1, 128], strides = [1, 1]} : vector<32x128xf32> to vector<1x128xf32>
    %85 = vector.broadcast %83 : vector<16x1xf32> to vector<16x128xf32>
    %86 = vector.broadcast %84 : vector<1x128xf32> to vector<16x128xf32>
    %87 = arith.mulf %85, %86 : vector<16x128xf32>
    %88 = arith.addf %82, %87 : vector<16x128xf32>
    %89 = vector.extract_strided_slice %0 {offsets = [0, 14], sizes = [16, 1], strides = [1, 1]} : vector<16x32xf32> to vector<16x1xf32>
    %90 = vector.extract_strided_slice %3 {offsets = [14, 0], sizes = [1, 128], strides = [1, 1]} : vector<32x128xf32> to vector<1x128xf32>
    %91 = vector.broadcast %89 : vector<16x1xf32> to vector<16x128xf32>
    %92 = vector.broadcast %90 : vector<1x128xf32> to vector<16x128xf32>
    %93 = arith.mulf %91, %92 : vector<16x128xf32>
    %94 = arith.addf %88, %93 : vector<16x128xf32>
    %95 = vector.extract_strided_slice %0 {offsets = [0, 15], sizes = [16, 1], strides = [1, 1]} : vector<16x32xf32> to vector<16x1xf32>
    %96 = vector.extract_strided_slice %3 {offsets = [15, 0], sizes = [1, 128], strides = [1, 1]} : vector<32x128xf32> to vector<1x128xf32>
    %97 = vector.broadcast %95 : vector<16x1xf32> to vector<16x128xf32>
    %98 = vector.broadcast %96 : vector<1x128xf32> to vector<16x128xf32>
    %99 = arith.mulf %97, %98 : vector<16x128xf32>
    %100 = arith.addf %94, %99 : vector<16x128xf32>
    %101 = vector.extract_strided_slice %0 {offsets = [0, 16], sizes = [16, 1], strides = [1, 1]} : vector<16x32xf32> to vector<16x1xf32>
    %102 = vector.extract_strided_slice %3 {offsets = [16, 0], sizes = [1, 128], strides = [1, 1]} : vector<32x128xf32> to vector<1x128xf32>
    %103 = vector.broadcast %101 : vector<16x1xf32> to vector<16x128xf32>
    %104 = vector.broadcast %102 : vector<1x128xf32> to vector<16x128xf32>
    %105 = arith.mulf %103, %104 : vector<16x128xf32>
    %106 = arith.addf %100, %105 : vector<16x128xf32>
    %107 = vector.extract_strided_slice %0 {offsets = [0, 17], sizes = [16, 1], strides = [1, 1]} : vector<16x32xf32> to vector<16x1xf32>
    %108 = vector.extract_strided_slice %3 {offsets = [17, 0], sizes = [1, 128], strides = [1, 1]} : vector<32x128xf32> to vector<1x128xf32>
    %109 = vector.broadcast %107 : vector<16x1xf32> to vector<16x128xf32>
    %110 = vector.broadcast %108 : vector<1x128xf32> to vector<16x128xf32>
    %111 = arith.mulf %109, %110 : vector<16x128xf32>
    %112 = arith.addf %106, %111 : vector<16x128xf32>
    %113 = vector.extract_strided_slice %0 {offsets = [0, 18], sizes = [16, 1], strides = [1, 1]} : vector<16x32xf32> to vector<16x1xf32>
    %114 = vector.extract_strided_slice %3 {offsets = [18, 0], sizes = [1, 128], strides = [1, 1]} : vector<32x128xf32> to vector<1x128xf32>
    %115 = vector.broadcast %113 : vector<16x1xf32> to vector<16x128xf32>
    %116 = vector.broadcast %114 : vector<1x128xf32> to vector<16x128xf32>
    %117 = arith.mulf %115, %116 : vector<16x128xf32>
    %118 = arith.addf %112, %117 : vector<16x128xf32>
    %119 = vector.extract_strided_slice %0 {offsets = [0, 19], sizes = [16, 1], strides = [1, 1]} : vector<16x32xf32> to vector<16x1xf32>
    %120 = vector.extract_strided_slice %3 {offsets = [19, 0], sizes = [1, 128], strides = [1, 1]} : vector<32x128xf32> to vector<1x128xf32>
    %121 = vector.broadcast %119 : vector<16x1xf32> to vector<16x128xf32>
    %122 = vector.broadcast %120 : vector<1x128xf32> to vector<16x128xf32>
    %123 = arith.mulf %121, %122 : vector<16x128xf32>
    %124 = arith.addf %118, %123 : vector<16x128xf32>
    %125 = vector.extract_strided_slice %0 {offsets = [0, 20], sizes = [16, 1], strides = [1, 1]} : vector<16x32xf32> to vector<16x1xf32>
    %126 = vector.extract_strided_slice %3 {offsets = [20, 0], sizes = [1, 128], strides = [1, 1]} : vector<32x128xf32> to vector<1x128xf32>
    %127 = vector.broadcast %125 : vector<16x1xf32> to vector<16x128xf32>
    %128 = vector.broadcast %126 : vector<1x128xf32> to vector<16x128xf32>
    %129 = arith.mulf %127, %128 : vector<16x128xf32>
    %130 = arith.addf %124, %129 : vector<16x128xf32>
    %131 = vector.extract_strided_slice %0 {offsets = [0, 21], sizes = [16, 1], strides = [1, 1]} : vector<16x32xf32> to vector<16x1xf32>
    %132 = vector.extract_strided_slice %3 {offsets = [21, 0], sizes = [1, 128], strides = [1, 1]} : vector<32x128xf32> to vector<1x128xf32>
    %133 = vector.broadcast %131 : vector<16x1xf32> to vector<16x128xf32>
    %134 = vector.broadcast %132 : vector<1x128xf32> to vector<16x128xf32>
    %135 = arith.mulf %133, %134 : vector<16x128xf32>
    %136 = arith.addf %130, %135 : vector<16x128xf32>
    %137 = vector.extract_strided_slice %0 {offsets = [0, 22], sizes = [16, 1], strides = [1, 1]} : vector<16x32xf32> to vector<16x1xf32>
    %138 = vector.extract_strided_slice %3 {offsets = [22, 0], sizes = [1, 128], strides = [1, 1]} : vector<32x128xf32> to vector<1x128xf32>
    %139 = vector.broadcast %137 : vector<16x1xf32> to vector<16x128xf32>
    %140 = vector.broadcast %138 : vector<1x128xf32> to vector<16x128xf32>
    %141 = arith.mulf %139, %140 : vector<16x128xf32>
    %142 = arith.addf %136, %141 : vector<16x128xf32>
    %143 = vector.extract_strided_slice %0 {offsets = [0, 23], sizes = [16, 1], strides = [1, 1]} : vector<16x32xf32> to vector<16x1xf32>
    %144 = vector.extract_strided_slice %3 {offsets = [23, 0], sizes = [1, 128], strides = [1, 1]} : vector<32x128xf32> to vector<1x128xf32>
    %145 = vector.broadcast %143 : vector<16x1xf32> to vector<16x128xf32>
    %146 = vector.broadcast %144 : vector<1x128xf32> to vector<16x128xf32>
    %147 = arith.mulf %145, %146 : vector<16x128xf32>
    %148 = arith.addf %142, %147 : vector<16x128xf32>
    %149 = vector.extract_strided_slice %0 {offsets = [0, 24], sizes = [16, 1], strides = [1, 1]} : vector<16x32xf32> to vector<16x1xf32>
    %150 = vector.extract_strided_slice %3 {offsets = [24, 0], sizes = [1, 128], strides = [1, 1]} : vector<32x128xf32> to vector<1x128xf32>
    %151 = vector.broadcast %149 : vector<16x1xf32> to vector<16x128xf32>
    %152 = vector.broadcast %150 : vector<1x128xf32> to vector<16x128xf32>
    %153 = arith.mulf %151, %152 : vector<16x128xf32>
    %154 = arith.addf %148, %153 : vector<16x128xf32>
    %155 = vector.extract_strided_slice %0 {offsets = [0, 25], sizes = [16, 1], strides = [1, 1]} : vector<16x32xf32> to vector<16x1xf32>
    %156 = vector.extract_strided_slice %3 {offsets = [25, 0], sizes = [1, 128], strides = [1, 1]} : vector<32x128xf32> to vector<1x128xf32>
    %157 = vector.broadcast %155 : vector<16x1xf32> to vector<16x128xf32>
    %158 = vector.broadcast %156 : vector<1x128xf32> to vector<16x128xf32>
    %159 = arith.mulf %157, %158 : vector<16x128xf32>
    %160 = arith.addf %154, %159 : vector<16x128xf32>
    %161 = vector.extract_strided_slice %0 {offsets = [0, 26], sizes = [16, 1], strides = [1, 1]} : vector<16x32xf32> to vector<16x1xf32>
    %162 = vector.extract_strided_slice %3 {offsets = [26, 0], sizes = [1, 128], strides = [1, 1]} : vector<32x128xf32> to vector<1x128xf32>
    %163 = vector.broadcast %161 : vector<16x1xf32> to vector<16x128xf32>
    %164 = vector.broadcast %162 : vector<1x128xf32> to vector<16x128xf32>
    %165 = arith.mulf %163, %164 : vector<16x128xf32>
    %166 = arith.addf %160, %165 : vector<16x128xf32>
    %167 = vector.extract_strided_slice %0 {offsets = [0, 27], sizes = [16, 1], strides = [1, 1]} : vector<16x32xf32> to vector<16x1xf32>
    %168 = vector.extract_strided_slice %3 {offsets = [27, 0], sizes = [1, 128], strides = [1, 1]} : vector<32x128xf32> to vector<1x128xf32>
    %169 = vector.broadcast %167 : vector<16x1xf32> to vector<16x128xf32>
    %170 = vector.broadcast %168 : vector<1x128xf32> to vector<16x128xf32>
    %171 = arith.mulf %169, %170 : vector<16x128xf32>
    %172 = arith.addf %166, %171 : vector<16x128xf32>
    %173 = vector.extract_strided_slice %0 {offsets = [0, 28], sizes = [16, 1], strides = [1, 1]} : vector<16x32xf32> to vector<16x1xf32>
    %174 = vector.extract_strided_slice %3 {offsets = [28, 0], sizes = [1, 128], strides = [1, 1]} : vector<32x128xf32> to vector<1x128xf32>
    %175 = vector.broadcast %173 : vector<16x1xf32> to vector<16x128xf32>
    %176 = vector.broadcast %174 : vector<1x128xf32> to vector<16x128xf32>
    %177 = arith.mulf %175, %176 : vector<16x128xf32>
    %178 = arith.addf %172, %177 : vector<16x128xf32>
    %179 = vector.extract_strided_slice %0 {offsets = [0, 29], sizes = [16, 1], strides = [1, 1]} : vector<16x32xf32> to vector<16x1xf32>
    %180 = vector.extract_strided_slice %3 {offsets = [29, 0], sizes = [1, 128], strides = [1, 1]} : vector<32x128xf32> to vector<1x128xf32>
    %181 = vector.broadcast %179 : vector<16x1xf32> to vector<16x128xf32>
    %182 = vector.broadcast %180 : vector<1x128xf32> to vector<16x128xf32>
    %183 = arith.mulf %181, %182 : vector<16x128xf32>
    %184 = arith.addf %178, %183 : vector<16x128xf32>
    %185 = vector.extract_strided_slice %0 {offsets = [0, 30], sizes = [16, 1], strides = [1, 1]} : vector<16x32xf32> to vector<16x1xf32>
    %186 = vector.extract_strided_slice %3 {offsets = [30, 0], sizes = [1, 128], strides = [1, 1]} : vector<32x128xf32> to vector<1x128xf32>
    %187 = vector.broadcast %185 : vector<16x1xf32> to vector<16x128xf32>
    %188 = vector.broadcast %186 : vector<1x128xf32> to vector<16x128xf32>
    %189 = arith.mulf %187, %188 : vector<16x128xf32>
    %190 = arith.addf %184, %189 : vector<16x128xf32>
    %191 = vector.extract_strided_slice %0 {offsets = [0, 31], sizes = [16, 1], strides = [1, 1]} : vector<16x32xf32> to vector<16x1xf32>
    %192 = vector.extract_strided_slice %3 {offsets = [31, 0], sizes = [1, 128], strides = [1, 1]} : vector<32x128xf32> to vector<1x128xf32>
    %193 = vector.broadcast %191 : vector<16x1xf32> to vector<16x128xf32>
    %194 = vector.broadcast %192 : vector<1x128xf32> to vector<16x128xf32>
    %195 = arith.mulf %193, %194 : vector<16x128xf32>
    %196 = arith.addf %190, %195 : vector<16x128xf32>
    %197 = vector.broadcast %1 : vector<16x1xf32> to vector<16x128xf32>
    %198 = arith.addf %196, %197 : vector<16x128xf32>
    %199 = vector.extract_strided_slice %198 {offsets = [0, 0], sizes = [8, 128], strides = [1, 1]} : vector<16x128xf32> to vector<8x128xf32>
    %200 = math.tanh %199 : vector<8x128xf32>
    %201 = vector.extract_strided_slice %198 {offsets = [8, 0], sizes = [8, 128], strides = [1, 1]} : vector<16x128xf32> to vector<8x128xf32>
    %cst_6 = arith.constant dense<0xFF800000> : vector<8xf32>
    %202 = vector.multi_reduction <maximumf>, %200, %cst_6 [1] : vector<8x128xf32> to vector<8xf32>
    %203 = vector.shape_cast %202 : vector<8xf32> to vector<8x1xf32>
    %204 = vector.broadcast %203 : vector<8x1xf32> to vector<8x128xf32>
    %205 = arith.subf %200, %204 : vector<8x128xf32>
    %206 = math.exp %205 : vector<8x128xf32>
    %cst_7 = arith.constant dense<0.000000e+00> : vector<8xf32>
    %207 = vector.multi_reduction <add>, %206, %cst_7 [1] : vector<8x128xf32> to vector<8xf32>
    %208 = vector.shape_cast %207 : vector<8xf32> to vector<8x1xf32>
    %209 = vector.broadcast %208 : vector<8x1xf32> to vector<8x128xf32>
    %210 = arith.divf %206, %209 : vector<8x128xf32>
    %c0_8 = arith.constant 0 : index
    %c0_9 = arith.constant 0 : index
    %c0_10 = arith.constant 0 : index
    %211 = vector.load %arg4[%c0_8, %c0_9, %c0_10] : memref<2x8x128xf32, #tpu.memory_space<vmem>>, vector<1x8x128xf32>
    %212 = vector.shape_cast %211 : vector<1x8x128xf32> to vector<8x128xf32>
    %213 = vector.shape_cast %210 : vector<8x128xf32> to vector<1x8x128xf32>
    tpu.vector_store %arg4[%c0_8, %c0_9, %c0_10], %213 {strides = array<i32>} : memref<2x8x128xf32, #tpu.memory_space<vmem>>, vector<1x8x128xf32>,
    %c0_11 = arith.constant 0 : index
    %c0_12 = arith.constant 0 : index
    %c0_13 = arith.constant 0 : index
    %214 = vector.load %arg5[%c0_11, %c0_12, %c0_13] : memref<2x8x128xf32, #tpu.memory_space<vmem>>, vector<1x8x128xf32>
    %215 = vector.shape_cast %214 : vector<1x8x128xf32> to vector<8x128xf32>
    %216 = vector.shape_cast %201 : vector<8x128xf32> to vector<1x8x128xf32>
    tpu.vector_store %arg5[%c0_11, %c0_12, %c0_13], %216 {strides = array<i32>} : memref<2x8x128xf32, #tpu.memory_space<vmem>>, vector<1x8x128xf32>,
    %217 = arith.mulf %210, %201 : vector<8x128xf32>
    %cst_14 = arith.constant dense<0.000000e+00> : vector<8xf32>
    %218 = vector.multi_reduction <add>, %217, %cst_14 [1] : vector<8x128xf32> to vector<8xf32>
    %c0_15 = arith.constant 0 : index
    %c0_16 = arith.constant 0 : index
    %219 = vector.load %arg3[%c0_15, %c0_16] : memref<2x8xf32, #tpu.memory_space<vmem>>, vector<1x8xf32>
    %220 = vector.shape_cast %219 : vector<1x8xf32> to vector<8xf32>
    %221 = vector.shape_cast %218 : vector<8xf32> to vector<1x8xf32>
    tpu.vector_store %arg3[%c0_15, %c0_16], %221 {strides = array<i32>} : memref<2x8xf32, #tpu.memory_space<vmem>>, vector<1x8xf32>,
    %c1 = arith.constant 1 : index
    %c0_17 = arith.constant 0 : index
    %c0_18 = arith.constant 0 : index
    %222 = vector.load %arg0[%c1, %c0_17, %c0_18] : memref<2x32x128xf32, #tpu.memory_space<vmem>>, vector<1x32x128xf32>
    %223 = vector.shape_cast %222 : vector<1x32x128xf32> to vector<32x128xf32>
    %cst_19 = arith.constant 0.000000e+00 : f32
    %224 = vector.broadcast %cst_19 : f32 to vector<16x128xf32>
    %225 = vector.extract_strided_slice %0 {offsets = [0, 0], sizes = [16, 1], strides = [1, 1]} : vector<16x32xf32> to vector<16x1xf32>
    %226 = vector.extract_strided_slice %223 {offsets = [0, 0], sizes = [1, 128], strides = [1, 1]} : vector<32x128xf32> to vector<1x128xf32>
    %227 = vector.broadcast %225 : vector<16x1xf32> to vector<16x128xf32>
    %228 = vector.broadcast %226 : vector<1x128xf32> to vector<16x128xf32>
    %229 = arith.mulf %227, %228 : vector<16x128xf32>
    %230 = arith.addf %224, %229 : vector<16x128xf32>
    %231 = vector.extract_strided_slice %0 {offsets = [0, 1], sizes = [16, 1], strides = [1, 1]} : vector<16x32xf32> to vector<16x1xf32>
    %232 = vector.extract_strided_slice %223 {offsets = [1, 0], sizes = [1, 128], strides = [1, 1]} : vector<32x128xf32> to vector<1x128xf32>
    %233 = vector.broadcast %231 : vector<16x1xf32> to vector<16x128xf32>
    %234 = vector.broadcast %232 : vector<1x128xf32> to vector<16x128xf32>
    %235 = arith.mulf %233, %234 : vector<16x128xf32>
    %236 = arith.addf %230, %235 : vector<16x128xf32>
    %237 = vector.extract_strided_slice %0 {offsets = [0, 2], sizes = [16, 1], strides = [1, 1]} : vector<16x32xf32> to vector<16x1xf32>
    %238 = vector.extract_strided_slice %223 {offsets = [2, 0], sizes = [1, 128], strides = [1, 1]} : vector<32x128xf32> to vector<1x128xf32>
    %239 = vector.broadcast %237 : vector<16x1xf32> to vector<16x128xf32>
    %240 = vector.broadcast %238 : vector<1x128xf32> to vector<16x128xf32>
    %241 = arith.mulf %239, %240 : vector<16x128xf32>
    %242 = arith.addf %236, %241 : vector<16x128xf32>
    %243 = vector.extract_strided_slice %0 {offsets = [0, 3], sizes = [16, 1], strides = [1, 1]} : vector<16x32xf32> to vector<16x1xf32>
    %244 = vector.extract_strided_slice %223 {offsets = [3, 0], sizes = [1, 128], strides = [1, 1]} : vector<32x128xf32> to vector<1x128xf32>
    %245 = vector.broadcast %243 : vector<16x1xf32> to vector<16x128xf32>
    %246 = vector.broadcast %244 : vector<1x128xf32> to vector<16x128xf32>
    %247 = arith.mulf %245, %246 : vector<16x128xf32>
    %248 = arith.addf %242, %247 : vector<16x128xf32>
    %249 = vector.extract_strided_slice %0 {offsets = [0, 4], sizes = [16, 1], strides = [1, 1]} : vector<16x32xf32> to vector<16x1xf32>
    %250 = vector.extract_strided_slice %223 {offsets = [4, 0], sizes = [1, 128], strides = [1, 1]} : vector<32x128xf32> to vector<1x128xf32>
    %251 = vector.broadcast %249 : vector<16x1xf32> to vector<16x128xf32>
    %252 = vector.broadcast %250 : vector<1x128xf32> to vector<16x128xf32>
    %253 = arith.mulf %251, %252 : vector<16x128xf32>
    %254 = arith.addf %248, %253 : vector<16x128xf32>
    %255 = vector.extract_strided_slice %0 {offsets = [0, 5], sizes = [16, 1], strides = [1, 1]} : vector<16x32xf32> to vector<16x1xf32>
    %256 = vector.extract_strided_slice %223 {offsets = [5, 0], sizes = [1, 128], strides = [1, 1]} : vector<32x128xf32> to vector<1x128xf32>
    %257 = vector.broadcast %255 : vector<16x1xf32> to vector<16x128xf32>
    %258 = vector.broadcast %256 : vector<1x128xf32> to vector<16x128xf32>
    %259 = arith.mulf %257, %258 : vector<16x128xf32>
    %260 = arith.addf %254, %259 : vector<16x128xf32>
    %261 = vector.extract_strided_slice %0 {offsets = [0, 6], sizes = [16, 1], strides = [1, 1]} : vector<16x32xf32> to vector<16x1xf32>
    %262 = vector.extract_strided_slice %223 {offsets = [6, 0], sizes = [1, 128], strides = [1, 1]} : vector<32x128xf32> to vector<1x128xf32>
    %263 = vector.broadcast %261 : vector<16x1xf32> to vector<16x128xf32>
    %264 = vector.broadcast %262 : vector<1x128xf32> to vector<16x128xf32>
    %265 = arith.mulf %263, %264 : vector<16x128xf32>
    %266 = arith.addf %260, %265 : vector<16x128xf32>
    %267 = vector.extract_strided_slice %0 {offsets = [0, 7], sizes = [16, 1], strides = [1, 1]} : vector<16x32xf32> to vector<16x1xf32>
    %268 = vector.extract_strided_slice %223 {offsets = [7, 0], sizes = [1, 128], strides = [1, 1]} : vector<32x128xf32> to vector<1x128xf32>
    %269 = vector.broadcast %267 : vector<16x1xf32> to vector<16x128xf32>
    %270 = vector.broadcast %268 : vector<1x128xf32> to vector<16x128xf32>
    %271 = arith.mulf %269, %270 : vector<16x128xf32>
    %272 = arith.addf %266, %271 : vector<16x128xf32>
    %273 = vector.extract_strided_slice %0 {offsets = [0, 8], sizes = [16, 1], strides = [1, 1]} : vector<16x32xf32> to vector<16x1xf32>
    %274 = vector.extract_strided_slice %223 {offsets = [8, 0], sizes = [1, 128], strides = [1, 1]} : vector<32x128xf32> to vector<1x128xf32>
    %275 = vector.broadcast %273 : vector<16x1xf32> to vector<16x128xf32>
    %276 = vector.broadcast %274 : vector<1x128xf32> to vector<16x128xf32>
    %277 = arith.mulf %275, %276 : vector<16x128xf32>
    %278 = arith.addf %272, %277 : vector<16x128xf32>
    %279 = vector.extract_strided_slice %0 {offsets = [0, 9], sizes = [16, 1], strides = [1, 1]} : vector<16x32xf32> to vector<16x1xf32>
    %280 = vector.extract_strided_slice %223 {offsets = [9, 0], sizes = [1, 128], strides = [1, 1]} : vector<32x128xf32> to vector<1x128xf32>
    %281 = vector.broadcast %279 : vector<16x1xf32> to vector<16x128xf32>
    %282 = vector.broadcast %280 : vector<1x128xf32> to vector<16x128xf32>
    %283 = arith.mulf %281, %282 : vector<16x128xf32>
    %284 = arith.addf %278, %283 : vector<16x128xf32>
    %285 = vector.extract_strided_slice %0 {offsets = [0, 10], sizes = [16, 1], strides = [1, 1]} : vector<16x32xf32> to vector<16x1xf32>
    %286 = vector.extract_strided_slice %223 {offsets = [10, 0], sizes = [1, 128], strides = [1, 1]} : vector<32x128xf32> to vector<1x128xf32>
    %287 = vector.broadcast %285 : vector<16x1xf32> to vector<16x128xf32>
    %288 = vector.broadcast %286 : vector<1x128xf32> to vector<16x128xf32>
    %289 = arith.mulf %287, %288 : vector<16x128xf32>
    %290 = arith.addf %284, %289 : vector<16x128xf32>
    %291 = vector.extract_strided_slice %0 {offsets = [0, 11], sizes = [16, 1], strides = [1, 1]} : vector<16x32xf32> to vector<16x1xf32>
    %292 = vector.extract_strided_slice %223 {offsets = [11, 0], sizes = [1, 128], strides = [1, 1]} : vector<32x128xf32> to vector<1x128xf32>
    %293 = vector.broadcast %291 : vector<16x1xf32> to vector<16x128xf32>
    %294 = vector.broadcast %292 : vector<1x128xf32> to vector<16x128xf32>
    %295 = arith.mulf %293, %294 : vector<16x128xf32>
    %296 = arith.addf %290, %295 : vector<16x128xf32>
    %297 = vector.extract_strided_slice %0 {offsets = [0, 12], sizes = [16, 1], strides = [1, 1]} : vector<16x32xf32> to vector<16x1xf32>
    %298 = vector.extract_strided_slice %223 {offsets = [12, 0], sizes = [1, 128], strides = [1, 1]} : vector<32x128xf32> to vector<1x128xf32>
    %299 = vector.broadcast %297 : vector<16x1xf32> to vector<16x128xf32>
    %300 = vector.broadcast %298 : vector<1x128xf32> to vector<16x128xf32>
    %301 = arith.mulf %299, %300 : vector<16x128xf32>
    %302 = arith.addf %296, %301 : vector<16x128xf32>
    %303 = vector.extract_strided_slice %0 {offsets = [0, 13], sizes = [16, 1], strides = [1, 1]} : vector<16x32xf32> to vector<16x1xf32>
    %304 = vector.extract_strided_slice %223 {offsets = [13, 0], sizes = [1, 128], strides = [1, 1]} : vector<32x128xf32> to vector<1x128xf32>
    %305 = vector.broadcast %303 : vector<16x1xf32> to vector<16x128xf32>
    %306 = vector.broadcast %304 : vector<1x128xf32> to vector<16x128xf32>
    %307 = arith.mulf %305, %306 : vector<16x128xf32>
    %308 = arith.addf %302, %307 : vector<16x128xf32>
    %309 = vector.extract_strided_slice %0 {offsets = [0, 14], sizes = [16, 1], strides = [1, 1]} : vector<16x32xf32> to vector<16x1xf32>
    %310 = vector.extract_strided_slice %223 {offsets = [14, 0], sizes = [1, 128], strides = [1, 1]} : vector<32x128xf32> to vector<1x128xf32>
    %311 = vector.broadcast %309 : vector<16x1xf32> to vector<16x128xf32>
    %312 = vector.broadcast %310 : vector<1x128xf32> to vector<16x128xf32>
    %313 = arith.mulf %311, %312 : vector<16x128xf32>
    %314 = arith.addf %308, %313 : vector<16x128xf32>
    %315 = vector.extract_strided_slice %0 {offsets = [0, 15], sizes = [16, 1], strides = [1, 1]} : vector<16x32xf32> to vector<16x1xf32>
    %316 = vector.extract_strided_slice %223 {offsets = [15, 0], sizes = [1, 128], strides = [1, 1]} : vector<32x128xf32> to vector<1x128xf32>
    %317 = vector.broadcast %315 : vector<16x1xf32> to vector<16x128xf32>
    %318 = vector.broadcast %316 : vector<1x128xf32> to vector<16x128xf32>
    %319 = arith.mulf %317, %318 : vector<16x128xf32>
    %320 = arith.addf %314, %319 : vector<16x128xf32>
    %321 = vector.extract_strided_slice %0 {offsets = [0, 16], sizes = [16, 1], strides = [1, 1]} : vector<16x32xf32> to vector<16x1xf32>
    %322 = vector.extract_strided_slice %223 {offsets = [16, 0], sizes = [1, 128], strides = [1, 1]} : vector<32x128xf32> to vector<1x128xf32>
    %323 = vector.broadcast %321 : vector<16x1xf32> to vector<16x128xf32>
    %324 = vector.broadcast %322 : vector<1x128xf32> to vector<16x128xf32>
    %325 = arith.mulf %323, %324 : vector<16x128xf32>
    %326 = arith.addf %320, %325 : vector<16x128xf32>
    %327 = vector.extract_strided_slice %0 {offsets = [0, 17], sizes = [16, 1], strides = [1, 1]} : vector<16x32xf32> to vector<16x1xf32>
    %328 = vector.extract_strided_slice %223 {offsets = [17, 0], sizes = [1, 128], strides = [1, 1]} : vector<32x128xf32> to vector<1x128xf32>
    %329 = vector.broadcast %327 : vector<16x1xf32> to vector<16x128xf32>
    %330 = vector.broadcast %328 : vector<1x128xf32> to vector<16x128xf32>
    %331 = arith.mulf %329, %330 : vector<16x128xf32>
    %332 = arith.addf %326, %331 : vector<16x128xf32>
    %333 = vector.extract_strided_slice %0 {offsets = [0, 18], sizes = [16, 1], strides = [1, 1]} : vector<16x32xf32> to vector<16x1xf32>
    %334 = vector.extract_strided_slice %223 {offsets = [18, 0], sizes = [1, 128], strides = [1, 1]} : vector<32x128xf32> to vector<1x128xf32>
    %335 = vector.broadcast %333 : vector<16x1xf32> to vector<16x128xf32>
    %336 = vector.broadcast %334 : vector<1x128xf32> to vector<16x128xf32>
    %337 = arith.mulf %335, %336 : vector<16x128xf32>
    %338 = arith.addf %332, %337 : vector<16x128xf32>
    %339 = vector.extract_strided_slice %0 {offsets = [0, 19], sizes = [16, 1], strides = [1, 1]} : vector<16x32xf32> to vector<16x1xf32>
    %340 = vector.extract_strided_slice %223 {offsets = [19, 0], sizes = [1, 128], strides = [1, 1]} : vector<32x128xf32> to vector<1x128xf32>
    %341 = vector.broadcast %339 : vector<16x1xf32> to vector<16x128xf32>
    %342 = vector.broadcast %340 : vector<1x128xf32> to vector<16x128xf32>
    %343 = arith.mulf %341, %342 : vector<16x128xf32>
    %344 = arith.addf %338, %343 : vector<16x128xf32>
    %345 = vector.extract_strided_slice %0 {offsets = [0, 20], sizes = [16, 1], strides = [1, 1]} : vector<16x32xf32> to vector<16x1xf32>
    %346 = vector.extract_strided_slice %223 {offsets = [20, 0], sizes = [1, 128], strides = [1, 1]} : vector<32x128xf32> to vector<1x128xf32>
    %347 = vector.broadcast %345 : vector<16x1xf32> to vector<16x128xf32>
    %348 = vector.broadcast %346 : vector<1x128xf32> to vector<16x128xf32>
    %349 = arith.mulf %347, %348 : vector<16x128xf32>
    %350 = arith.addf %344, %349 : vector<16x128xf32>
    %351 = vector.extract_strided_slice %0 {offsets = [0, 21], sizes = [16, 1], strides = [1, 1]} : vector<16x32xf32> to vector<16x1xf32>
    %352 = vector.extract_strided_slice %223 {offsets = [21, 0], sizes = [1, 128], strides = [1, 1]} : vector<32x128xf32> to vector<1x128xf32>
    %353 = vector.broadcast %351 : vector<16x1xf32> to vector<16x128xf32>
    %354 = vector.broadcast %352 : vector<1x128xf32> to vector<16x128xf32>
    %355 = arith.mulf %353, %354 : vector<16x128xf32>
    %356 = arith.addf %350, %355 : vector<16x128xf32>
    %357 = vector.extract_strided_slice %0 {offsets = [0, 22], sizes = [16, 1], strides = [1, 1]} : vector<16x32xf32> to vector<16x1xf32>
    %358 = vector.extract_strided_slice %223 {offsets = [22, 0], sizes = [1, 128], strides = [1, 1]} : vector<32x128xf32> to vector<1x128xf32>
    %359 = vector.broadcast %357 : vector<16x1xf32> to vector<16x128xf32>
    %360 = vector.broadcast %358 : vector<1x128xf32> to vector<16x128xf32>
    %361 = arith.mulf %359, %360 : vector<16x128xf32>
    %362 = arith.addf %356, %361 : vector<16x128xf32>
    %363 = vector.extract_strided_slice %0 {offsets = [0, 23], sizes = [16, 1], strides = [1, 1]} : vector<16x32xf32> to vector<16x1xf32>
    %364 = vector.extract_strided_slice %223 {offsets = [23, 0], sizes = [1, 128], strides = [1, 1]} : vector<32x128xf32> to vector<1x128xf32>
    %365 = vector.broadcast %363 : vector<16x1xf32> to vector<16x128xf32>
    %366 = vector.broadcast %364 : vector<1x128xf32> to vector<16x128xf32>
    %367 = arith.mulf %365, %366 : vector<16x128xf32>
    %368 = arith.addf %362, %367 : vector<16x128xf32>
    %369 = vector.extract_strided_slice %0 {offsets = [0, 24], sizes = [16, 1], strides = [1, 1]} : vector<16x32xf32> to vector<16x1xf32>
    %370 = vector.extract_strided_slice %223 {offsets = [24, 0], sizes = [1, 128], strides = [1, 1]} : vector<32x128xf32> to vector<1x128xf32>
    %371 = vector.broadcast %369 : vector<16x1xf32> to vector<16x128xf32>
    %372 = vector.broadcast %370 : vector<1x128xf32> to vector<16x128xf32>
    %373 = arith.mulf %371, %372 : vector<16x128xf32>
    %374 = arith.addf %368, %373 : vector<16x128xf32>
    %375 = vector.extract_strided_slice %0 {offsets = [0, 25], sizes = [16, 1], strides = [1, 1]} : vector<16x32xf32> to vector<16x1xf32>
    %376 = vector.extract_strided_slice %223 {offsets = [25, 0], sizes = [1, 128], strides = [1, 1]} : vector<32x128xf32> to vector<1x128xf32>
    %377 = vector.broadcast %375 : vector<16x1xf32> to vector<16x128xf32>
    %378 = vector.broadcast %376 : vector<1x128xf32> to vector<16x128xf32>
    %379 = arith.mulf %377, %378 : vector<16x128xf32>
    %380 = arith.addf %374, %379 : vector<16x128xf32>
    %381 = vector.extract_strided_slice %0 {offsets = [0, 26], sizes = [16, 1], strides = [1, 1]} : vector<16x32xf32> to vector<16x1xf32>
    %382 = vector.extract_strided_slice %223 {offsets = [26, 0], sizes = [1, 128], strides = [1, 1]} : vector<32x128xf32> to vector<1x128xf32>
    %383 = vector.broadcast %381 : vector<16x1xf32> to vector<16x128xf32>
    %384 = vector.broadcast %382 : vector<1x128xf32> to vector<16x128xf32>
    %385 = arith.mulf %383, %384 : vector<16x128xf32>
    %386 = arith.addf %380, %385 : vector<16x128xf32>
    %387 = vector.extract_strided_slice %0 {offsets = [0, 27], sizes = [16, 1], strides = [1, 1]} : vector<16x32xf32> to vector<16x1xf32>
    %388 = vector.extract_strided_slice %223 {offsets = [27, 0], sizes = [1, 128], strides = [1, 1]} : vector<32x128xf32> to vector<1x128xf32>
    %389 = vector.broadcast %387 : vector<16x1xf32> to vector<16x128xf32>
    %390 = vector.broadcast %388 : vector<1x128xf32> to vector<16x128xf32>
    %391 = arith.mulf %389, %390 : vector<16x128xf32>
    %392 = arith.addf %386, %391 : vector<16x128xf32>
    %393 = vector.extract_strided_slice %0 {offsets = [0, 28], sizes = [16, 1], strides = [1, 1]} : vector<16x32xf32> to vector<16x1xf32>
    %394 = vector.extract_strided_slice %223 {offsets = [28, 0], sizes = [1, 128], strides = [1, 1]} : vector<32x128xf32> to vector<1x128xf32>
    %395 = vector.broadcast %393 : vector<16x1xf32> to vector<16x128xf32>
    %396 = vector.broadcast %394 : vector<1x128xf32> to vector<16x128xf32>
    %397 = arith.mulf %395, %396 : vector<16x128xf32>
    %398 = arith.addf %392, %397 : vector<16x128xf32>
    %399 = vector.extract_strided_slice %0 {offsets = [0, 29], sizes = [16, 1], strides = [1, 1]} : vector<16x32xf32> to vector<16x1xf32>
    %400 = vector.extract_strided_slice %223 {offsets = [29, 0], sizes = [1, 128], strides = [1, 1]} : vector<32x128xf32> to vector<1x128xf32>
    %401 = vector.broadcast %399 : vector<16x1xf32> to vector<16x128xf32>
    %402 = vector.broadcast %400 : vector<1x128xf32> to vector<16x128xf32>
    %403 = arith.mulf %401, %402 : vector<16x128xf32>
    %404 = arith.addf %398, %403 : vector<16x128xf32>
    %405 = vector.extract_strided_slice %0 {offsets = [0, 30], sizes = [16, 1], strides = [1, 1]} : vector<16x32xf32> to vector<16x1xf32>
    %406 = vector.extract_strided_slice %223 {offsets = [30, 0], sizes = [1, 128], strides = [1, 1]} : vector<32x128xf32> to vector<1x128xf32>
    %407 = vector.broadcast %405 : vector<16x1xf32> to vector<16x128xf32>
    %408 = vector.broadcast %406 : vector<1x128xf32> to vector<16x128xf32>
    %409 = arith.mulf %407, %408 : vector<16x128xf32>
    %410 = arith.addf %404, %409 : vector<16x128xf32>
    %411 = vector.extract_strided_slice %0 {offsets = [0, 31], sizes = [16, 1], strides = [1, 1]} : vector<16x32xf32> to vector<16x1xf32>
    %412 = vector.extract_strided_slice %223 {offsets = [31, 0], sizes = [1, 128], strides = [1, 1]} : vector<32x128xf32> to vector<1x128xf32>
    %413 = vector.broadcast %411 : vector<16x1xf32> to vector<16x128xf32>
    %414 = vector.broadcast %412 : vector<1x128xf32> to vector<16x128xf32>
    %415 = arith.mulf %413, %414 : vector<16x128xf32>
    %416 = arith.addf %410, %415 : vector<16x128xf32>
    %417 = vector.broadcast %1 : vector<16x1xf32> to vector<16x128xf32>
    %418 = arith.addf %416, %417 : vector<16x128xf32>
    %419 = vector.extract_strided_slice %418 {offsets = [0, 0], sizes = [8, 128], strides = [1, 1]} : vector<16x128xf32> to vector<8x128xf32>
    %420 = math.tanh %419 : vector<8x128xf32>
    %421 = vector.extract_strided_slice %418 {offsets = [8, 0], sizes = [8, 128], strides = [1, 1]} : vector<16x128xf32> to vector<8x128xf32>
    %cst_20 = arith.constant dense<0xFF800000> : vector<8xf32>
    %422 = vector.multi_reduction <maximumf>, %420, %cst_20 [1] : vector<8x128xf32> to vector<8xf32>
    %423 = vector.shape_cast %422 : vector<8xf32> to vector<8x1xf32>
    %424 = vector.broadcast %423 : vector<8x1xf32> to vector<8x128xf32>
    %425 = arith.subf %420, %424 : vector<8x128xf32>
    %426 = math.exp %425 : vector<8x128xf32>
    %cst_21 = arith.constant dense<0.000000e+00> : vector<8xf32>
    %427 = vector.multi_reduction <add>, %426, %cst_21 [1] : vector<8x128xf32> to vector<8xf32>
    %428 = vector.shape_cast %427 : vector<8xf32> to vector<8x1xf32>
    %429 = vector.broadcast %428 : vector<8x1xf32> to vector<8x128xf32>
    %430 = arith.divf %426, %429 : vector<8x128xf32>
    %c1_22 = arith.constant 1 : index
    %c0_23 = arith.constant 0 : index
    %c0_24 = arith.constant 0 : index
    %431 = vector.load %arg4[%c1_22, %c0_23, %c0_24] : memref<2x8x128xf32, #tpu.memory_space<vmem>>, vector<1x8x128xf32>
    %432 = vector.shape_cast %431 : vector<1x8x128xf32> to vector<8x128xf32>
    %433 = vector.shape_cast %430 : vector<8x128xf32> to vector<1x8x128xf32>
    tpu.vector_store %arg4[%c1_22, %c0_23, %c0_24], %433 {strides = array<i32>} : memref<2x8x128xf32, #tpu.memory_space<vmem>>, vector<1x8x128xf32>,
    %c1_25 = arith.constant 1 : index
    %c0_26 = arith.constant 0 : index
    %c0_27 = arith.constant 0 : index
    %434 = vector.load %arg5[%c1_25, %c0_26, %c0_27] : memref<2x8x128xf32, #tpu.memory_space<vmem>>, vector<1x8x128xf32>
    %435 = vector.shape_cast %434 : vector<1x8x128xf32> to vector<8x128xf32>
    %436 = vector.shape_cast %421 : vector<8x128xf32> to vector<1x8x128xf32>
    tpu.vector_store %arg5[%c1_25, %c0_26, %c0_27], %436 {strides = array<i32>} : memref<2x8x128xf32, #tpu.memory_space<vmem>>, vector<1x8x128xf32>,
    %437 = arith.mulf %430, %421 : vector<8x128xf32>
    %cst_28 = arith.constant dense<0.000000e+00> : vector<8xf32>
    %438 = vector.multi_reduction <add>, %437, %cst_28 [1] : vector<8x128xf32> to vector<8xf32>
    %c1_29 = arith.constant 1 : index
    %c0_30 = arith.constant 0 : index
    %439 = vector.load %arg3[%c1_29, %c0_30] : memref<2x8xf32, #tpu.memory_space<vmem>>, vector<1x8xf32>
    %440 = vector.shape_cast %439 : vector<1x8xf32> to vector<8xf32>
    %441 = vector.shape_cast %438 : vector<8xf32> to vector<1x8xf32>
    tpu.vector_store %arg3[%c1_29, %c0_30], %441 {strides = array<i32>} : memref<2x8xf32, #tpu.memory_space<vmem>>, vector<1x8xf32>,
    return
  }
}

</mosaic_0001>

<llo_original>
// kernel: att_block_v2.1
$region0: #{att_block_v2.1}
  #allocation0 [shape = 'u32[]', space=smem, size = 0x4, offset = 0x4, fixed_abs, tag = 'smem constant byte address 0x4 - core index']
  #allocation1 [shape = 'u32[72,128]{1,0:T(1,128)}', space=vmem, size = 0x9000, scoped, tag = 'internal scratch']
  %s0 = inlined_call_operand.hbm [shape: f32[2,32,128], index: 0, kind: input, shape index: {}]
  %s1 = inlined_call_operand.vmem [shape: f32[16,32], index: 1, kind: input, shape index: {}]
  %s2 = inlined_call_operand.vmem [shape: f32[16,1], index: 2, kind: input, shape index: {}]
  %s3 = inlined_call_operand.hbm [shape: f32[2,8], index: 3, kind: output, shape index: {0}]
  %s4 = inlined_call_operand.hbm [shape: f32[2,8,128], index: 4, kind: output, shape index: {1}]
  %s5 = inlined_call_operand.hbm [shape: f32[2,8,128], index: 5, kind: output, shape index: {2}]
  %6 = xla_tuple %s3, %s4, %s5
  %s7 = sld [smem:[#allocation0]]
  $region42: #{att_block_v2.1} parent=0
    _
  %s9 = ssub.s32 1, %s7
  %s10 = scalar_select 0, %s9, %s7
  $region1: #{att_block_v2.1} parent=0
    #allocation2 [shape = 'u8[32768]{0}', space=vmem, size = 0x8000, scoped, tag = 'input window, operand 0, single buffered']
    #allocation3 [shape = 's32[1]{0}', space=sflag, size = 0x4, scoped, tag = 'scoped memory for att_block_v2.1']
    #allocation4 [shape = 's32[1]{0}', space=sflag, size = 0x4, scoped, tag = 'scoped memory for att_block_v2.1']
    #allocation5 [shape = 'u8[1024]{0}', space=vmem, size = 0x400, scoped, tag = 'output window, operand 0, single buffered']
    #allocation6 [shape = 'u8[8192]{0}', space=vmem, size = 0x2000, scoped, tag = 'output window, operand 1, single buffered']
    #allocation7 [shape = 's32[1]{0}', space=sflag, size = 0x4, scoped, tag = 'scoped memory for att_block_v2.1']
    #allocation8 [shape = 'u8[8192]{0}', space=vmem, size = 0x2000, scoped, tag = 'output window, operand 2, single buffered']
    %11 = vsyncpa [#allocation3], 0
    %12 = vsyncpa [#allocation4], 0
    %13 = vsyncpa [#allocation7], 0
    // Predicated region
    $region2: #{att_block_v2.1} parent=1 // pred_check
      _
    $region3: #{att_block_v2.1} parent=1 // pred_check_branch
      %15 = sbr.rel (0) target = $region5
    $region4: #{att_block_v2.1} parent=1 // pred_region
      %17 = vsyncadd [#allocation3], 0
      %s18 = sshll.u32 %s0, 4
      %s19 = int_to_ptr.hbm [resolvable:$true] %s18
      %s20 = sshll.u32 [#allocation2], 4
      %s21 = int_to_ptr.vmem [resolvable:$true] %s20
      %26 = dma.hbm_to_vmem [thread:$0]  %s19, 1024, %s21, [#allocation3], 128, 128, 8
    $region5: #{att_block_v2.1} parent=1 // pred_fallthru
      _
    // Predicated region
    $region6: #{att_block_v2.1} parent=1 // pred_check
      _
    $region7: #{att_block_v2.1} parent=1 // pred_check_branch
      %28 = sbr.rel (0) target = $region9
    $region8: #{att_block_v2.1} parent=1 // pred_region
      _
    $region9: #{att_block_v2.1} parent=1 // pred_fallthru
      _
    // Predicated region
    $region10: #{att_block_v2.1} parent=1 // pred_check
      _
    $region11: #{att_block_v2.1} parent=1 // pred_check_branch
      %30 = sbr.rel (0) target = $region13
    $region12: #{att_block_v2.1} parent=1 // pred_region
      _
    $region13: #{att_block_v2.1} parent=1 // pred_fallthru
      _
    // Predicated region
    $region14: #{att_block_v2.1} parent=1 // pred_check
      _
    $region15: #{att_block_v2.1} parent=1 // pred_check_branch
      %32 = sbr.rel (0) target = $region17
    $region16: #{att_block_v2.1} parent=1 // pred_region
      %34 = dma.done [#allocation3], 1024
    $region17: #{att_block_v2.1} parent=1 // pred_fallthru
      _
    %v35 = vld [vmem:[%s1] sm:$0xff]
    %v36 = vld [vmem:[%s1 + $0x8] sm:$0xff]
    %v37 = vld [vmem:[%s2] sm:$0xff]
    %v38 = vld [vmem:[%s2 + $0x8] sm:$0xff]
    %v39 = vld [vmem:[#allocation2] sm:$0xff]
    %v40 = vld [vmem:[#allocation2 + $0x8] sm:$0xff]
    %v41 = vld [vmem:[#allocation2 + $0x10] sm:$0xff]
    %v42 = vld [vmem:[#allocation2 + $0x18] sm:$0xff]
    %44 = vset.pattern.permute.xlu0 0
    %45 = vperm.xlu0 %44, %v35
    %v46 = vpop.permute.xlu0 %45
    %49 = vset.pattern.permute.xlu0 0
    %50 = vperm.xlu0 %49, %v36
    %v51 = vpop.permute.xlu0 %50
    %v53 = vperm.slane %v39, 0
    %v54 = vmul.f32 %v46, %v53
    %v55 = vmul.f32 %v51, %v53
    %v56 = vadd.f32 %v54, 0.0
    %v57 = vadd.f32 %v55, 0.0
    %58 = vset.pattern.permute.xlu0 1
    %59 = vperm.xlu0 %58, %v35
    %v60 = vpop.permute.xlu0 %59
    %62 = vset.pattern.permute.xlu0 1
    %63 = vperm.xlu0 %62, %v36
    %v64 = vpop.permute.xlu0 %63
    %v66 = vperm.slane %v39, 1
    %v67 = vmul.f32 %v60, %v66
    %v68 = vmul.f32 %v64, %v66
    %v69 = vadd.f32 %v56, %v67
    %v70 = vadd.f32 %v57, %v68
    %71 = vset.pattern.permute.xlu0 2
    %72 = vperm.xlu0 %71, %v35
    %v73 = vpop.permute.xlu0 %72
    %75 = vset.pattern.permute.xlu0 2
    %76 = vperm.xlu0 %75, %v36
    %v77 = vpop.permute.xlu0 %76
    %v79 = vperm.slane %v39, 2
    %v80 = vmul.f32 %v73, %v79
    %v81 = vmul.f32 %v77, %v79
    %v82 = vadd.f32 %v69, %v80
    %v83 = vadd.f32 %v70, %v81
    %84 = vset.pattern.permute.xlu0 3
    %85 = vperm.xlu0 %84, %v35
    %v86 = vpop.permute.xlu0 %85
    %88 = vset.pattern.permute.xlu0 3
    %89 = vperm.xlu0 %88, %v36
    %v90 = vpop.permute.xlu0 %89
    %v92 = vperm.slane %v39, 3
    %v93 = vmul.f32 %v86, %v92
    %v94 = vmul.f32 %v90, %v92
    %v95 = vadd.f32 %v82, %v93
    %v96 = vadd.f32 %v83, %v94
    %97 = vset.pattern.permute.xlu0 4
    %98 = vperm.xlu0 %97, %v35
    %v99 = vpop.permute.xlu0 %98
    %101 = vset.pattern.permute.xlu0 4
    %102 = vperm.xlu0 %101, %v36
    %v103 = vpop.permute.xlu0 %102
    %v105 = vperm.slane %v39, 4
    %v106 = vmul.f32 %v99, %v105
    %v107 = vmul.f32 %v103, %v105
    %v108 = vadd.f32 %v95, %v106
    %v109 = vadd.f32 %v96, %v107
    %110 = vset.pattern.permute.xlu0 5
    %111 = vperm.xlu0 %110, %v35
    %v112 = vpop.permute.xlu0 %111
    %114 = vset.pattern.permute.xlu0 5
    %115 = vperm.xlu0 %114, %v36
    %v116 = vpop.permute.xlu0 %115
    %v118 = vperm.slane %v39, 5
    %v119 = vmul.f32 %v112, %v118
    %v120 = vmul.f32 %v116, %v118
    %v121 = vadd.f32 %v108, %v119
    %v122 = vadd.f32 %v109, %v120
    %123 = vset.pattern.permute.xlu0 6
    %124 = vperm.xlu0 %123, %v35
    %v125 = vpop.permute.xlu0 %124
    %127 = vset.pattern.permute.xlu0 6
    %128 = vperm.xlu0 %127, %v36
    %v129 = vpop.permute.xlu0 %128
    %v131 = vperm.slane %v39, 6
    %v132 = vmul.f32 %v125, %v131
    %v133 = vmul.f32 %v129, %v131
    %v134 = vadd.f32 %v121, %v132
    %v135 = vadd.f32 %v122, %v133
    %136 = vset.pattern.permute.xlu0 7
    %137 = vperm.xlu0 %136, %v35
    %v138 = vpop.permute.xlu0 %137
    %140 = vset.pattern.permute.xlu0 7
    %141 = vperm.xlu0 %140, %v36
    %v142 = vpop.permute.xlu0 %141
    %v144 = vperm.slane %v39, 7
    %v145 = vmul.f32 %v138, %v144
    %v146 = vmul.f32 %v142, %v144
    %v147 = vadd.f32 %v134, %v145
    %v148 = vadd.f32 %v135, %v146
    %149 = vset.pattern.permute.xlu0 8
    %150 = vperm.xlu0 %149, %v35
    %v151 = vpop.permute.xlu0 %150
    %153 = vset.pattern.permute.xlu0 8
    %154 = vperm.xlu0 %153, %v36
    %v155 = vpop.permute.xlu0 %154
    %v157 = vperm.slane %v40, 0
    %v158 = vmul.f32 %v151, %v157
    %v159 = vmul.f32 %v155, %v157
    %v160 = vadd.f32 %v147, %v158
    %v161 = vadd.f32 %v148, %v159
    %162 = vset.pattern.permute.xlu0 9
    %163 = vperm.xlu0 %162, %v35
    %v164 = vpop.permute.xlu0 %163
    %166 = vset.pattern.permute.xlu0 9
    %167 = vperm.xlu0 %166, %v36
    %v168 = vpop.permute.xlu0 %167
    %v170 = vperm.slane %v40, 1
    %v171 = vmul.f32 %v164, %v170
    %v172 = vmul.f32 %v168, %v170
    %v173 = vadd.f32 %v160, %v171
    %v174 = vadd.f32 %v161, %v172
    %175 = vset.pattern.permute.xlu0 10
    %176 = vperm.xlu0 %175, %v35
    %v177 = vpop.permute.xlu0 %176
    %179 = vset.pattern.permute.xlu0 10
    %180 = vperm.xlu0 %179, %v36
    %v181 = vpop.permute.xlu0 %180
    %v183 = vperm.slane %v40, 2
    %v184 = vmul.f32 %v177, %v183
    %v185 = vmul.f32 %v181, %v183
    %v186 = vadd.f32 %v173, %v184
    %v187 = vadd.f32 %v174, %v185
    %188 = vset.pattern.permute.xlu0 11
    %189 = vperm.xlu0 %188, %v35
    %v190 = vpop.permute.xlu0 %189
    %192 = vset.pattern.permute.xlu0 11
    %193 = vperm.xlu0 %192, %v36
    %v194 = vpop.permute.xlu0 %193
    %v196 = vperm.slane %v40, 3
    %v197 = vmul.f32 %v190, %v196
    %v198 = vmul.f32 %v194, %v196
    %v199 = vadd.f32 %v186, %v197
    %v200 = vadd.f32 %v187, %v198
    %201 = vset.pattern.permute.xlu0 12
    %202 = vperm.xlu0 %201, %v35
    %v203 = vpop.permute.xlu0 %202
    %205 = vset.pattern.permute.xlu0 12
    %206 = vperm.xlu0 %205, %v36
    %v207 = vpop.permute.xlu0 %206
    %v209 = vperm.slane %v40, 4
    %v210 = vmul.f32 %v203, %v209
    %v211 = vmul.f32 %v207, %v209
    %v212 = vadd.f32 %v199, %v210
    %v213 = vadd.f32 %v200, %v211
    %214 = vset.pattern.permute.xlu0 13
    %215 = vperm.xlu0 %214, %v35
    %v216 = vpop.permute.xlu0 %215
    %218 = vset.pattern.permute.xlu0 13
    %219 = vperm.xlu0 %218, %v36
    %v220 = vpop.permute.xlu0 %219
    %v222 = vperm.slane %v40, 5
    %v223 = vmul.f32 %v216, %v222
    %v224 = vmul.f32 %v220, %v222
    %v225 = vadd.f32 %v212, %v223
    %v226 = vadd.f32 %v213, %v224
    %227 = vset.pattern.permute.xlu0 14
    %228 = vperm.xlu0 %227, %v35
    %v229 = vpop.permute.xlu0 %228
    %231 = vset.pattern.permute.xlu0 14
    %232 = vperm.xlu0 %231, %v36
    %v233 = vpop.permute.xlu0 %232
    %v235 = vperm.slane %v40, 6
    %v236 = vmul.f32 %v229, %v235
    %v237 = vmul.f32 %v233, %v235
    %v238 = vadd.f32 %v225, %v236
    %v239 = vadd.f32 %v226, %v237
    %240 = vset.pattern.permute.xlu0 15
    %241 = vperm.xlu0 %240, %v35
    %v242 = vpop.permute.xlu0 %241
    %244 = vset.pattern.permute.xlu0 15
    %245 = vperm.xlu0 %244, %v36
    %v246 = vpop.permute.xlu0 %245
    %v248 = vperm.slane %v40, 7
    %v249 = vmul.f32 %v242, %v248
    %v250 = vmul.f32 %v246, %v248
    %v251 = vadd.f32 %v238, %v249
    %v252 = vadd.f32 %v239, %v250
    %253 = vset.pattern.permute.xlu0 16
    %254 = vperm.xlu0 %253, %v35
    %v255 = vpop.permute.xlu0 %254
    %257 = vset.pattern.permute.xlu0 16
    %258 = vperm.xlu0 %257, %v36
    %v259 = vpop.permute.xlu0 %258
    %v261 = vperm.slane %v41, 0
    %v262 = vmul.f32 %v255, %v261
    %v263 = vmul.f32 %v259, %v261
    %v264 = vadd.f32 %v251, %v262
    %v265 = vadd.f32 %v252, %v263
    %266 = vset.pattern.permute.xlu0 17
    %267 = vperm.xlu0 %266, %v35
    %v268 = vpop.permute.xlu0 %267
    %270 = vset.pattern.permute.xlu0 17
    %271 = vperm.xlu0 %270, %v36
    %v272 = vpop.permute.xlu0 %271
    %v274 = vperm.slane %v41, 1
    %v275 = vmul.f32 %v268, %v274
    %v276 = vmul.f32 %v272, %v274
    %v277 = vadd.f32 %v264, %v275
    %v278 = vadd.f32 %v265, %v276
    %279 = vset.pattern.permute.xlu0 18
    %280 = vperm.xlu0 %279, %v35
    %v281 = vpop.permute.xlu0 %280
    %283 = vset.pattern.permute.xlu0 18
    %284 = vperm.xlu0 %283, %v36
    %v285 = vpop.permute.xlu0 %284
    %v287 = vperm.slane %v41, 2
    %v288 = vmul.f32 %v281, %v287
    %v289 = vmul.f32 %v285, %v287
    %v290 = vadd.f32 %v277, %v288
    %v291 = vadd.f32 %v278, %v289
    %292 = vset.pattern.permute.xlu0 19
    %293 = vperm.xlu0 %292, %v35
    %v294 = vpop.permute.xlu0 %293
    %296 = vset.pattern.permute.xlu0 19
    %297 = vperm.xlu0 %296, %v36
    %v298 = vpop.permute.xlu0 %297
    %v300 = vperm.slane %v41, 3
    %v301 = vmul.f32 %v294, %v300
    %v302 = vmul.f32 %v298, %v300
    %v303 = vadd.f32 %v290, %v301
    %v304 = vadd.f32 %v291, %v302
    %305 = vset.pattern.permute.xlu0 20
    %306 = vperm.xlu0 %305, %v35
    %v307 = vpop.permute.xlu0 %306
    %309 = vset.pattern.permute.xlu0 20
    %310 = vperm.xlu0 %309, %v36
    %v311 = vpop.permute.xlu0 %310
    %v313 = vperm.slane %v41, 4
    %v314 = vmul.f32 %v307, %v313
    %v315 = vmul.f32 %v311, %v313
    %v316 = vadd.f32 %v303, %v314
    %v317 = vadd.f32 %v304, %v315
    %318 = vset.pattern.permute.xlu0 21
    %319 = vperm.xlu0 %318, %v35
    %v320 = vpop.permute.xlu0 %319
    %322 = vset.pattern.permute.xlu0 21
    %323 = vperm.xlu0 %322, %v36
    %v324 = vpop.permute.xlu0 %323
    %v326 = vperm.slane %v41, 5
    %v327 = vmul.f32 %v320, %v326
    %v328 = vmul.f32 %v324, %v326
    %v329 = vadd.f32 %v316, %v327
    %v330 = vadd.f32 %v317, %v328
    %331 = vset.pattern.permute.xlu0 22
    %332 = vperm.xlu0 %331, %v35
    %v333 = vpop.permute.xlu0 %332
    %335 = vset.pattern.permute.xlu0 22
    %336 = vperm.xlu0 %335, %v36
    %v337 = vpop.permute.xlu0 %336
    %v339 = vperm.slane %v41, 6
    %v340 = vmul.f32 %v333, %v339
    %v341 = vmul.f32 %v337, %v339
    %v342 = vadd.f32 %v329, %v340
    %v343 = vadd.f32 %v330, %v341
    %344 = vset.pattern.permute.xlu0 23
    %345 = vperm.xlu0 %344, %v35
    %v346 = vpop.permute.xlu0 %345
    %348 = vset.pattern.permute.xlu0 23
    %349 = vperm.xlu0 %348, %v36
    %v350 = vpop.permute.xlu0 %349
    %v352 = vperm.slane %v41, 7
    %v353 = vmul.f32 %v346, %v352
    %v354 = vmul.f32 %v350, %v352
    %v355 = vadd.f32 %v342, %v353
    %v356 = vadd.f32 %v343, %v354
    %357 = vset.pattern.permute.xlu0 24
    %358 = vperm.xlu0 %357, %v35
    %v359 = vpop.permute.xlu0 %358
    %361 = vset.pattern.permute.xlu0 24
    %362 = vperm.xlu0 %361, %v36
    %v363 = vpop.permute.xlu0 %362
    %v365 = vperm.slane %v42, 0
    %v366 = vmul.f32 %v359, %v365
    %v367 = vmul.f32 %v363, %v365
    %v368 = vadd.f32 %v355, %v366
    %v369 = vadd.f32 %v356, %v367
    %370 = vset.pattern.permute.xlu0 25
    %371 = vperm.xlu0 %370, %v35
    %v372 = vpop.permute.xlu0 %371
    %374 = vset.pattern.permute.xlu0 25
    %375 = vperm.xlu0 %374, %v36
    %v376 = vpop.permute.xlu0 %375
    %v378 = vperm.slane %v42, 1
    %v379 = vmul.f32 %v372, %v378
    %v380 = vmul.f32 %v376, %v378
    %v381 = vadd.f32 %v368, %v379
    %v382 = vadd.f32 %v369, %v380
    %383 = vset.pattern.permute.xlu0 26
    %384 = vperm.xlu0 %383, %v35
    %v385 = vpop.permute.xlu0 %384
    %387 = vset.pattern.permute.xlu0 26
    %388 = vperm.xlu0 %387, %v36
    %v389 = vpop.permute.xlu0 %388
    %v391 = vperm.slane %v42, 2
    %v392 = vmul.f32 %v385, %v391
    %v393 = vmul.f32 %v389, %v391
    %v394 = vadd.f32 %v381, %v392
    %v395 = vadd.f32 %v382, %v393
    %396 = vset.pattern.permute.xlu0 27
    %397 = vperm.xlu0 %396, %v35
    %v398 = vpop.permute.xlu0 %397
    %400 = vset.pattern.permute.xlu0 27
    %401 = vperm.xlu0 %400, %v36
    %v402 = vpop.permute.xlu0 %401
    %v404 = vperm.slane %v42, 3
    %v405 = vmul.f32 %v398, %v404
    %v406 = vmul.f32 %v402, %v404
    %v407 = vadd.f32 %v394, %v405
    %v408 = vadd.f32 %v395, %v406
    %409 = vset.pattern.permute.xlu0 28
    %410 = vperm.xlu0 %409, %v35
    %v411 = vpop.permute.xlu0 %410
    %413 = vset.pattern.permute.xlu0 28
    %414 = vperm.xlu0 %413, %v36
    %v415 = vpop.permute.xlu0 %414
    %v417 = vperm.slane %v42, 4
    %v418 = vmul.f32 %v411, %v417
    %v419 = vmul.f32 %v415, %v417
    %v420 = vadd.f32 %v407, %v418
    %v421 = vadd.f32 %v408, %v419
    %422 = vset.pattern.permute.xlu0 29
    %423 = vperm.xlu0 %422, %v35
    %v424 = vpop.permute.xlu0 %423
    %426 = vset.pattern.permute.xlu0 29
    %427 = vperm.xlu0 %426, %v36
    %v428 = vpop.permute.xlu0 %427
    %v430 = vperm.slane %v42, 5
    %v431 = vmul.f32 %v424, %v430
    %v432 = vmul.f32 %v428, %v430
    %v433 = vadd.f32 %v420, %v431
    %v434 = vadd.f32 %v421, %v432
    %435 = vset.pattern.permute.xlu0 30
    %436 = vperm.xlu0 %435, %v35
    %v437 = vpop.permute.xlu0 %436
    %439 = vset.pattern.permute.xlu0 30
    %440 = vperm.xlu0 %439, %v36
    %v441 = vpop.permute.xlu0 %440
    %v443 = vperm.slane %v42, 6
    %v444 = vmul.f32 %v437, %v443
    %v445 = vmul.f32 %v441, %v443
    %v446 = vadd.f32 %v433, %v444
    %v447 = vadd.f32 %v434, %v445
    %448 = vset.pattern.permute.xlu0 31
    %449 = vperm.xlu0 %448, %v35
    %v450 = vpop.permute.xlu0 %449
    %452 = vset.pattern.permute.xlu0 31
    %453 = vperm.xlu0 %452, %v36
    %v454 = vpop.permute.xlu0 %453
    %v456 = vperm.slane %v42, 7
    %v457 = vmul.f32 %v450, %v456
    %v458 = vmul.f32 %v454, %v456
    %v459 = vadd.f32 %v446, %v457
    %v460 = vadd.f32 %v447, %v458
    %462 = vset.pattern.permute.xlu0 0
    %463 = vperm.xlu0 %462, %v37
    %v464 = vpop.permute.xlu0 %463
    %467 = vset.pattern.permute.xlu0 0
    %468 = vperm.xlu0 %467, %v38
    %v469 = vpop.permute.xlu0 %468
    %v471 = vadd.f32 %v459, %v464
    %v472 = vadd.f32 %v460, %v469
    %v473 = vtanh.pop %v471
    %474 = vmax.xlane.f32.xlu0 %v473
    %v475 = vpop.xlane.xlu0 %474
    %v476 = vsub.f32 %v473, %v475
    %v477 = vmul.f32 %v476, 1.442695
    %v478 = vpow.pop %v477
    %479 = vadd.xlane.f32.xlu0 %v478
    %v480 = vpop.xlane.xlu0 %479
    %v481 = vrcp.pop %v480
    %v482 = vmul.f32 %v480, %v481
    %v483 = vsub.f32 1.0, %v482
    %v484 = vmul.f32 %v481, %v483
    %v485 = vadd.f32 %v481, %v484
    %vm486 = vweird.f32 %v480
    %vm487 = vweird.f32 %v481
    %vm488 = vmor %vm486, %vm487
    %v489 = vsel %vm488, %v481, %v485
    %v490 = vand.u32 2147483647, %v480
    %vm491 = vcmp.eq.f32.partialorder %v490, 8.507059e+37
    %v492 = vand.u32 %v480, 2147483648
    %v493 = vor.u32 1.1754944e-38, %v492
    %v494 = vsel %vm491, %v493, %v489
    %v495 = vmul.f32 %v478, %v494
    %496 = vst [vmem:[#allocation6] sm:$0xff] %v495
    %497 = vst [vmem:[#allocation8] sm:$0xff] %v472
    %v498 = vmul.f32 %v495, %v472
    %499 = vadd.xlane.f32.xlu0 %v498
    %v500 = vpop.xlane.xlu0 %499
    %v502 = vlaneseq
    %v503 = vand.u32 %v502, 127
    %v504 = vperm.slane %v500, %v503
    %vm506 = vcmask 57344
    %507 = vst.msk [vmem:[#allocation5] sm:$0x1] %vm506, %v504
    %s508 = scalar_lea.vmem [#allocation2], 32
    %v509 = vld [vmem:[%s508] sm:$0xff]
    %v510 = vld [vmem:[%s508 + $0x8] sm:$0xff]
    %v511 = vld [vmem:[%s508 + $0x10] sm:$0xff]
    %v512 = vld [vmem:[%s508 + $0x18] sm:$0xff]
    %v513 = vperm.slane %v509, 0
    %v514 = vmul.f32 %v46, %v513
    %v515 = vmul.f32 %v51, %v513
    %v516 = vadd.f32 %v514, 0.0
    %v517 = vadd.f32 %v515, 0.0
    %v518 = vperm.slane %v509, 1
    %v519 = vmul.f32 %v60, %v518
    %v520 = vmul.f32 %v64, %v518
    %v521 = vadd.f32 %v516, %v519
    %v522 = vadd.f32 %v517, %v520
    %v523 = vperm.slane %v509, 2
    %v524 = vmul.f32 %v73, %v523
    %v525 = vmul.f32 %v77, %v523
    %v526 = vadd.f32 %v521, %v524
    %v527 = vadd.f32 %v522, %v525
    %v528 = vperm.slane %v509, 3
    %v529 = vmul.f32 %v86, %v528
    %v530 = vmul.f32 %v90, %v528
    %v531 = vadd.f32 %v526, %v529
    %v532 = vadd.f32 %v527, %v530
    %v533 = vperm.slane %v509, 4
    %v534 = vmul.f32 %v99, %v533
    %v535 = vmul.f32 %v103, %v533
    %v536 = vadd.f32 %v531, %v534
    %v537 = vadd.f32 %v532, %v535
    %v538 = vperm.slane %v509, 5
    %v539 = vmul.f32 %v112, %v538
    %v540 = vmul.f32 %v116, %v538
    %v541 = vadd.f32 %v536, %v539
    %v542 = vadd.f32 %v537, %v540
    %v543 = vperm.slane %v509, 6
    %v544 = vmul.f32 %v125, %v543
    %v545 = vmul.f32 %v129, %v543
    %v546 = vadd.f32 %v541, %v544
    %v547 = vadd.f32 %v542, %v545
    %v548 = vperm.slane %v509, 7
    %v549 = vmul.f32 %v138, %v548
    %v550 = vmul.f32 %v142, %v548
    %v551 = vadd.f32 %v546, %v549
    %v552 = vadd.f32 %v547, %v550
    %v553 = vperm.slane %v510, 0
    %v554 = vmul.f32 %v151, %v553
    %v555 = vmul.f32 %v155, %v553
    %v556 = vadd.f32 %v551, %v554
    %v557 = vadd.f32 %v552, %v555
    %v558 = vperm.slane %v510, 1
    %v559 = vmul.f32 %v164, %v558
    %v560 = vmul.f32 %v168, %v558
    %v561 = vadd.f32 %v556, %v559
    %v562 = vadd.f32 %v557, %v560
    %v563 = vperm.slane %v510, 2
    %v564 = vmul.f32 %v177, %v563
    %v565 = vmul.f32 %v181, %v563
    %v566 = vadd.f32 %v561, %v564
    %v567 = vadd.f32 %v562, %v565
    %v568 = vperm.slane %v510, 3
    %v569 = vmul.f32 %v190, %v568
    %v570 = vmul.f32 %v194, %v568
    %v571 = vadd.f32 %v566, %v569
    %v572 = vadd.f32 %v567, %v570
    %v573 = vperm.slane %v510, 4
    %v574 = vmul.f32 %v203, %v573
    %v575 = vmul.f32 %v207, %v573
    %v576 = vadd.f32 %v571, %v574
    %v577 = vadd.f32 %v572, %v575
    %v578 = vperm.slane %v510, 5
    %v579 = vmul.f32 %v216, %v578
    %v580 = vmul.f32 %v220, %v578
    %v581 = vadd.f32 %v576, %v579
    %v582 = vadd.f32 %v577, %v580
    %v583 = vperm.slane %v510, 6
    %v584 = vmul.f32 %v229, %v583
    %v585 = vmul.f32 %v233, %v583
    %v586 = vadd.f32 %v581, %v584
    %v587 = vadd.f32 %v582, %v585
    %v588 = vperm.slane %v510, 7
    %v589 = vmul.f32 %v242, %v588
    %v590 = vmul.f32 %v246, %v588
    %v591 = vadd.f32 %v586, %v589
    %v592 = vadd.f32 %v587, %v590
    %v593 = vperm.slane %v511, 0
    %v594 = vmul.f32 %v255, %v593
    %v595 = vmul.f32 %v259, %v593
    %v596 = vadd.f32 %v591, %v594
    %v597 = vadd.f32 %v592, %v595
    %v598 = vperm.slane %v511, 1
    %v599 = vmul.f32 %v268, %v598
    %v600 = vmul.f32 %v272, %v598
    %v601 = vadd.f32 %v596, %v599
    %v602 = vadd.f32 %v597, %v600
    %v603 = vperm.slane %v511, 2
    %v604 = vmul.f32 %v281, %v603
    %v605 = vmul.f32 %v285, %v603
    %v606 = vadd.f32 %v601, %v604
    %v607 = vadd.f32 %v602, %v605
    %v608 = vperm.slane %v511, 3
    %v609 = vmul.f32 %v294, %v608
    %v610 = vmul.f32 %v298, %v608
    %v611 = vadd.f32 %v606, %v609
    %v612 = vadd.f32 %v607, %v610
    %v613 = vperm.slane %v511, 4
    %v614 = vmul.f32 %v307, %v613
    %v615 = vmul.f32 %v311, %v613
    %v616 = vadd.f32 %v611, %v614
    %v617 = vadd.f32 %v612, %v615
    %v618 = vperm.slane %v511, 5
    %v619 = vmul.f32 %v320, %v618
    %v620 = vmul.f32 %v324, %v618
    %v621 = vadd.f32 %v616, %v619
    %v622 = vadd.f32 %v617, %v620
    %v623 = vperm.slane %v511, 6
    %v624 = vmul.f32 %v333, %v623
    %v625 = vmul.f32 %v337, %v623
    %v626 = vadd.f32 %v621, %v624
    %v627 = vadd.f32 %v622, %v625
    %v628 = vperm.slane %v511, 7
    %v629 = vmul.f32 %v346, %v628
    %v630 = vmul.f32 %v350, %v628
    %v631 = vadd.f32 %v626, %v629
    %v632 = vadd.f32 %v627, %v630
    %v633 = vperm.slane %v512, 0
    %v634 = vmul.f32 %v359, %v633
    %v635 = vmul.f32 %v363, %v633
    %v636 = vadd.f32 %v631, %v634
    %v637 = vadd.f32 %v632, %v635
    %v638 = vperm.slane %v512, 1
    %v639 = vmul.f32 %v372, %v638
    %v640 = vmul.f32 %v376, %v638
    %v641 = vadd.f32 %v636, %v639
    %v642 = vadd.f32 %v637, %v640
    %v643 = vperm.slane %v512, 2
    %v644 = vmul.f32 %v385, %v643
    %v645 = vmul.f32 %v389, %v643
    %v646 = vadd.f32 %v641, %v644
    %v647 = vadd.f32 %v642, %v645
    %v648 = vperm.slane %v512, 3
    %v649 = vmul.f32 %v398, %v648
    %v650 = vmul.f32 %v402, %v648
    %v651 = vadd.f32 %v646, %v649
    %v652 = vadd.f32 %v647, %v650
    %v653 = vperm.slane %v512, 4
    %v654 = vmul.f32 %v411, %v653
    %v655 = vmul.f32 %v415, %v653
    %v656 = vadd.f32 %v651, %v654
    %v657 = vadd.f32 %v652, %v655
    %v658 = vperm.slane %v512, 5
    %v659 = vmul.f32 %v424, %v658
    %v660 = vmul.f32 %v428, %v658
    %v661 = vadd.f32 %v656, %v659
    %v662 = vadd.f32 %v657, %v660
    %v663 = vperm.slane %v512, 6
    %v664 = vmul.f32 %v437, %v663
    %v665 = vmul.f32 %v441, %v663
    %v666 = vadd.f32 %v661, %v664
    %v667 = vadd.f32 %v662, %v665
    %v668 = vperm.slane %v512, 7
    %v669 = vmul.f32 %v450, %v668
    %v670 = vmul.f32 %v454, %v668
    %v671 = vadd.f32 %v666, %v669
    %v672 = vadd.f32 %v667, %v670
    %v673 = vadd.f32 %v671, %v464
    %v674 = vadd.f32 %v672, %v469
    %v675 = vtanh.pop %v673
    %676 = vmax.xlane.f32.xlu0 %v675
    %v677 = vpop.xlane.xlu0 %676
    %v678 = vsub.f32 %v675, %v677
    %v679 = vmul.f32 %v678, 1.442695
    %v680 = vpow.pop %v679
    %681 = vadd.xlane.f32.xlu0 %v680
    %v682 = vpop.xlane.xlu0 %681
    %v683 = vrcp.pop %v682
    %v684 = vmul.f32 %v682, %v683
    %v685 = vsub.f32 1.0, %v684
    %v686 = vmul.f32 %v683, %v685
    %v687 = vadd.f32 %v683, %v686
    %vm688 = vweird.f32 %v682
    %vm689 = vweird.f32 %v683
    %vm690 = vmor %vm688, %vm689
    %v691 = vsel %vm690, %v683, %v687
    %v692 = vand.u32 2147483647, %v682
    %vm693 = vcmp.eq.f32.partialorder %v692, 8.507059e+37
    %v694 = vand.u32 %v682, 2147483648
    %v695 = vor.u32 1.1754944e-38, %v694
    %v696 = vsel %vm693, %v695, %v691
    %v697 = vmul.f32 %v680, %v696
    %s698 = scalar_lea.vmem [#allocation6], 8
    %699 = vst [vmem:[%s698] sm:$0xff] %v697
    %s700 = scalar_lea.vmem [#allocation8], 8
    %701 = vst [vmem:[%s700] sm:$0xff] %v674
    %v702 = vmul.f32 %v697, %v674
    %703 = vadd.xlane.f32.xlu0 %v702
    %v704 = vpop.xlane.xlu0 %703
    %v706 = vperm.slane %v704, %v503
    %708 = vst.msk [vmem:[#allocation5 + $0x1] sm:$0x1] %vm506, %v706
    // Predicated region
    $region18: #{att_block_v2.1} parent=1 // pred_check
      _
    $region19: #{att_block_v2.1} parent=1 // pred_check_branch
      %710 = sbr.rel (0) target = $region21
    $region20: #{att_block_v2.1} parent=1 // pred_region
      %712 = vsyncadd [#allocation4], 0
      %s714 = sshll.u32 [#allocation5], 4
      %s715 = int_to_ptr.vmem [resolvable:$true] %s714
      %s716 = sshll.u32 %s3, 4
      %s717 = int_to_ptr.hbm [resolvable:$true] %s716
      %719 = dma.vmem_to_hbm [thread:$0]  %s715, 32, %s717, [#allocation4]
    $region21: #{att_block_v2.1} parent=1 // pred_fallthru
      _
    // Predicated region
    $region22: #{att_block_v2.1} parent=1 // pred_check
      _
    $region23: #{att_block_v2.1} parent=1 // pred_check_branch
      %721 = sbr.rel (0) target = $region25
    $region24: #{att_block_v2.1} parent=1 // pred_region
      %723 = vsyncadd [#allocation7], 0
      %s724 = sshll.u32 [#allocation6], 4
      %s725 = int_to_ptr.vmem [resolvable:$true] %s724
      %s726 = sshll.u32 %s4, 4
      %s727 = int_to_ptr.hbm [resolvable:$true] %s726
      %732 = dma.vmem_to_hbm [thread:$0]  %s725, 256, %s727, [#allocation7], 128, 128, 8
    $region25: #{att_block_v2.1} parent=1 // pred_fallthru
      _
    // Predicated region
    $region26: #{att_block_v2.1} parent=1 // pred_check
      _
    $region27: #{att_block_v2.1} parent=1 // pred_check_branch
      %734 = sbr.rel (0) target = $region29
    $region28: #{att_block_v2.1} parent=1 // pred_region
      %736 = vsyncadd [#allocation7], 0
      %s737 = sshll.u32 [#allocation8], 4
      %s738 = int_to_ptr.vmem [resolvable:$true] %s737
      %s739 = sshll.u32 %s5, 4
      %s740 = int_to_ptr.hbm [resolvable:$true] %s739
      %745 = dma.vmem_to_hbm [thread:$0]  %s738, 256, %s740, [#allocation7], 128, 128, 8
    $region29: #{att_block_v2.1} parent=1 // pred_fallthru
      _
    // Predicated region
    $region30: #{att_block_v2.1} parent=1 // pred_check
      _
    $region31: #{att_block_v2.1} parent=1 // pred_check_branch
      %747 = sbr.rel (0) target = $region33
    $region32: #{att_block_v2.1} parent=1 // pred_region
      %749 = dma.done [#allocation4], 32
    $region33: #{att_block_v2.1} parent=1 // pred_fallthru
      _
    // Predicated region
    $region34: #{att_block_v2.1} parent=1 // pred_check
      _
    $region35: #{att_block_v2.1} parent=1 // pred_check_branch
      %751 = sbr.rel (0) target = $region37
    $region36: #{att_block_v2.1} parent=1 // pred_region
      %753 = dma.done [#allocation7], 256
    $region37: #{att_block_v2.1} parent=1 // pred_fallthru
      _
    // Predicated region
    $region38: #{att_block_v2.1} parent=1 // pred_check
      _
    $region39: #{att_block_v2.1} parent=1 // pred_check_branch
      %755 = sbr.rel (0) target = $region41
    $region40: #{att_block_v2.1} parent=1 // pred_region
      %757 = dma.done [#allocation7], 256
    $region41: #{att_block_v2.1} parent=1 // pred_fallthru
      _
    %758 = vsyncpa [#allocation3], 1
    %759 = vsyncpa [#allocation4], 1
    %760 = vsyncpa [#allocation7], 1

</llo_original>
